<compile_context>
chip_gen: v5e
topology: v5e:2x2
jax: 0.10.0
libtpu: 0.0.40
codegen_flags: <defaults>
</compile_context>

<pallas_src>
import jax
import jax.numpy as jnp
from jax import lax
from jax.experimental import pallas as pl
from jax.experimental.pallas import tpu as pltpu


def _round_up(x, m):
    return ((x + m - 1) // m) * m


def _default_tn(P):
    # Output lanes per grid step; 512 is safe on every generation (v6e/v7x can
    # take 1024 when the w3 tile + output tile still fit scoped VMEM).
    return min(512, _round_up(P, 128))


def _default_tm(B):
    # Row tile: multiple of 16 (bf16 sublane packing), capped at 256.
    return min(256, _round_up(max(B, 1), 16))


def _decoder_mlp_kernel(x_ref, w1a_ref, b1k_ref, w2_ref, b2_ref, w3_ref,
                        b3_ref, o_ref, h2_ref):
    """Grid step (i, j): row tile i, output-P tile j.

    At j == 0 the object-summed hidden activation for row tile i is computed
    (layers 1-2, unrolled over the K objects) and cached in the h2_ref VMEM
    scratch; every j then applies one fc3 output tile to the cached sum.
    """
    j = pl.program_id(1)
    num_objects = x_ref.shape[0]

    @pl.when(j == 0)
    def _():
        def per_object(k, acc):
            x = x_ref[k]                                           # [TM, D] bf16
            # fc1: the one-hot block of the original concat is a row-select of
            # w1[D:], pre-folded with b1 into the per-object bias row b1k[k].
            h = jnp.dot(x, w1a_ref[...], preferred_element_type=jnp.float32)
            h = jnp.maximum(h + b1k_ref[k], 0.0)                   # act1
            # fc2
            h = jnp.dot(h.astype(jnp.bfloat16), w2_ref[...],
                        preferred_element_type=jnp.float32) + b2_ref[...]
            h = jnp.maximum(h, 0.0)                                # act2
            return acc + h

        h2 = lax.fori_loop(0, num_objects, per_object,
                           jnp.zeros(h2_ref.shape, jnp.float32), unroll=True)
        h2_ref[...] = h2.astype(jnp.bfloat16)

    # fc3 once per (i, j) on the k-summed hidden state (linearity of the sum);
    # b3 is added num_objects times, matching fc3(h).sum(1).
    y = jnp.dot(h2_ref[...], w3_ref[...], preferred_element_type=jnp.float32)
    o_ref[...] = y + float(num_objects) * b3_ref[...]


def prepare_params(params, input_dim, num_objects, output_size, *, tn=None):
    """One-time parameter preprocessing (split / pad / bf16 cast).

    Hoisted out of the forward path so the padded w2 / w3 copies are not
    re-materialized on every call.
    """
    del num_objects  # implied by the w1 shape
    C, H, W = output_size
    P = C * H * W
    w1, b1, w2, b2, w3, b3 = params
    D = input_dim
    hidden = w1.shape[1]

    Hp = _round_up(hidden, 128)
    TN = tn if tn is not None else _default_tn(P)
    Pp = _round_up(P, TN)

    f32, bf16 = jnp.float32, jnp.bfloat16
    # [x | onehot_k] @ w1 + b1  ==  x @ w1[:D] + (w1[D:][k] + b1)
    w1a = w1[:D]
    b1k = w1[D:] + b1                                              # [K, hidden]

    w1a_p = jnp.pad(w1a, ((0, 0), (0, Hp - hidden))).astype(bf16)
    b1k_p = jnp.pad(b1k, ((0, 0), (0, Hp - hidden))).astype(f32)[:, None, :]
    w2_p = jnp.pad(w2, ((0, Hp - hidden), (0, Hp - hidden))).astype(bf16)
    b2_p = jnp.pad(b2, ((0, 0), (0, Hp - hidden))).astype(f32)
    w3_p = jnp.pad(w3, ((0, Hp - hidden), (0, Pp - P))).astype(bf16)
    b3_p = jnp.pad(b3, ((0, 0), (0, Pp - P))).astype(f32)
    return (w1a_p, b1k_p, w2_p, b2_p, w3_p, b3_p)


def decoder_mlp_forward(ins, prepared, num_objects, output_size, *,
                        tm=None, tn=None):
    """ins: [B, K, input_dim] float32.  Returns [B, C, H, W] float32."""
    B, K, D = ins.shape
    assert K == num_objects
    C, H, W = output_size
    P = C * H * W

    w1a_p, b1k_p, w2_p, b2_p, w3_p, b3_p = prepared
    Hp = w2_p.shape[0]
    Pp = w3_p.shape[1]

    TM = tm if tm is not None else _default_tm(B)
    TN = tn if tn is not None else _default_tn(P)
    assert Pp % TN == 0, "tn must match the value used in prepare_params"
    Bp = _round_up(B, TM)

    # Objects-major, zero-padded rows, bf16 for the MXU.
    x = jnp.pad(jnp.transpose(ins, (1, 0, 2)).astype(jnp.bfloat16),
                ((0, 0), (0, Bp - B), (0, 0)))                     # [K, Bp, D]

    grid = (Bp // TM, Pp // TN)

    # VMEM working set (double-buffered blocks + scratch); raise the scoped
    # limit only when the conservative 16 MiB default would be exceeded.
    vmem_bytes = 2 * (K * TM * D * 2 + D * Hp * 2 + K * Hp * 4 + Hp * Hp * 2
                      + Hp * 4 + Hp * TN * 2 + TN * 4 + TM * TN * 4) + TM * Hp * 2
    vmem_limit = None
    if vmem_bytes > 16 * 1024 * 1024:
        vmem_limit = min(_round_up(vmem_bytes + (4 << 20), 1 << 20), 64 << 20)

    flops = 2 * B * K * (D * Hp + Hp * Hp) + 2 * B * Hp * Pp
    bytes_accessed = (x.size * 2 + w1a_p.size * 2 + b1k_p.size * 4
                      + w2_p.size * 2 + b2_p.size * 4 + w3_p.size * 2
                      + b3_p.size * 4 + Bp * Pp * 4)

    out = pl.pallas_call(
        _decoder_mlp_kernel,
        out_shape=jax.ShapeDtypeStruct((Bp, Pp), jnp.float32),
        grid_spec=pltpu.PrefetchScalarGridSpec(
            num_scalar_prefetch=0,
            grid=grid,
            in_specs=[
                pl.BlockSpec((K, TM, D), lambda i, j: (0, i, 0)),   # x (row tile)
                pl.BlockSpec((D, Hp), lambda i, j: (0, 0)),         # w1a (resident)
                pl.BlockSpec((K, 1, Hp), lambda i, j: (0, 0, 0)),   # b1k (resident)
                pl.BlockSpec((Hp, Hp), lambda i, j: (0, 0)),        # w2  (resident)
                pl.BlockSpec((1, Hp), lambda i, j: (0, 0)),         # b2  (resident)
                pl.BlockSpec((Hp, TN), lambda i, j: (0, j)),        # w3  (P-tiled)
                pl.BlockSpec((1, TN), lambda i, j: (0, j)),         # b3  (P-tiled)
            ],
            out_specs=pl.BlockSpec((TM, TN), lambda i, j: (i, j)),
            scratch_shapes=[pltpu.VMEM((TM, Hp), jnp.bfloat16)],    # cached k-sum h2
        ),
        compiler_params=pltpu.CompilerParams(
            dimension_semantics=("parallel", "arbitrary"),
            vmem_limit_bytes=vmem_limit),
        cost_estimate=pl.CostEstimate(flops=flops, transcendentals=0,
                                      bytes_accessed=bytes_accessed),
    )(x, w1a_p, b1k_p, w2_p, b2_p, w3_p, b3_p)

    return out[:B, :P].reshape(B, C, H, W)


def init_params(key, input_dim, hidden_dim, num_objects, output_size):
    """Deterministic synthetic init (shapes mirror nn.Linear, stored as [in, out])."""
    C, H, W = output_size
    P = C * H * W
    d_in = input_dim + num_objects
    ks = jax.random.split(key, 6)
    scale = 0.1
    w1 = scale * jax.random.normal(ks[0], (d_in, hidden_dim), jnp.float32)
    b1 = scale * jax.random.normal(ks[1], (1, hidden_dim), jnp.float32)
    w2 = scale * jax.random.normal(ks[2], (hidden_dim, hidden_dim), jnp.float32)
    b2 = scale * jax.random.normal(ks[3], (1, hidden_dim), jnp.float32)
    w3 = scale * jax.random.normal(ks[4], (hidden_dim, P), jnp.float32)
    b3 = scale * jax.random.normal(ks[5], (1, P), jnp.float32)
    return (w1, b1, w2, b2, w3, b3)


def _reference_forward(ins, params, num_objects, output_size):
    """Pure-JAX f32 reference mirroring the PyTorch forward."""
    B, K, D = ins.shape
    C, H, W = output_size
    w1, b1, w2, b2, w3, b3 = params
    obj_ids = jnp.broadcast_to(jnp.eye(K, dtype=ins.dtype)[None], (B, K, K))
    h = jnp.concatenate([ins, obj_ids], axis=-1)
    h = jax.nn.relu(h @ w1 + b1[0])
    h = jax.nn.relu(h @ w2 + b2[0])
    h = (h @ w3 + b3[0]).sum(axis=1)
    return h.reshape(-1, C, H, W)


if __name__ == "__main__":
    # Small shapes consistent with the module's forward.
    batch = 20
    input_dim = 12
    hidden_dim = 32
    num_objects = 4
    output_size = (3, 16, 16)     # P = 768

    key = jax.random.PRNGKey(0)
    k_x, k_p = jax.random.split(key)
    ins = jax.random.normal(k_x, (batch, num_objects, input_dim), jnp.float32)
    params = init_params(k_p, input_dim, hidden_dim, num_objects, output_size)
    ref = _reference_forward(ins, params, num_objects, output_size)

    # (a) default tiling: one row tile (TM=32), TN=512 -> Pp=1024, two P tiles
    #     (exercises the cached layer-1/2 path across j).
    prepared = prepare_params(params, input_dim, num_objects, output_size)
    fwd = jax.jit(lambda x, p: decoder_mlp_forward(x, p, num_objects, output_size))
    out = jax.block_until_ready(fwd(ins, prepared))
    assert out.shape == (batch, *output_size), out.shape
    err = float(jnp.max(jnp.abs(out - ref)))
    assert jnp.allclose(out, ref, atol=5e-2, rtol=5e-2), \
        f"default-tiling mismatch vs reference (max abs err {err})"

    # (b) forced small tiles: 2 row tiles x 6 P tiles (exercises multi-tile
    #     rows, padded-row slicing and the scratch re-init at every j == 0).
    prepared_s = prepare_params(params, input_dim, num_objects, output_size, tn=128)
    fwd_s = jax.jit(lambda x, p: decoder_mlp_forward(
        x, p, num_objects, output_size, tm=16, tn=128))
    out_s = jax.block_until_ready(fwd_s(ins, prepared_s))
    err_s = float(jnp.max(jnp.abs(out_s - ref)))
    assert jnp.allclose(out_s, ref, atol=5e-2, rtol=5e-2), \
        f"small-tiling mismatch vs reference (max abs err {err_s})"

    print("KERNEL_OK")
</pallas_src>

<mosaic_0001>
module attributes {stable_mosaic.version = 11 : i64} {
  func.func @_decoder_mlp_kernel(%arg0: i32, %arg1: i32, %arg2: memref<4x32x12xbf16, #tpu.memory_space<vmem>>, %arg3: memref<12x128xbf16, #tpu.memory_space<vmem>>, %arg4: memref<4x1x128xf32, #tpu.memory_space<vmem>>, %arg5: memref<128x128xbf16, #tpu.memory_space<vmem>>, %arg6: memref<1x128xf32, #tpu.memory_space<vmem>>, %arg7: memref<128x512xbf16, #tpu.memory_space<vmem>>, %arg8: memref<1x512xf32, #tpu.memory_space<vmem>>, %arg9: memref<32x512xf32, #tpu.memory_space<vmem>>, %arg10: memref<32x128xbf16, #tpu.memory_space<vmem>>) attributes {dimension_semantics = [#tpu.dimension_semantics<parallel>, #tpu.dimension_semantics<arbitrary>], iteration_bounds = array<i64: 1, 2>, scalar_prefetch = 0 : i64, scratch_operands = 1 : i64, tpu.core_type = #tpu.core_type<tc>, window_params = [{transform_indices = @transform_0, window_bounds = array<i64: 4, 32, 12>}, {pipeline_mode = #tpu.pipeline_mode<synchronous>, transform_indices = @transform_1, window_bounds = array<i64: 12, 128>}, {pipeline_mode = #tpu.pipeline_mode<synchronous>, transform_indices = @transform_2, window_bounds = array<i64: 4, 1, 128>}, {pipeline_mode = #tpu.pipeline_mode<synchronous>, transform_indices = @transform_3, window_bounds = array<i64: 128, 128>}, {pipeline_mode = #tpu.pipeline_mode<synchronous>, transform_indices = @transform_4, window_bounds = array<i64: 1, 128>}, {transform_indices = @transform_5, window_bounds = array<i64: 128, 512>}, {transform_indices = @transform_6, window_bounds = array<i64: 1, 512>}, {transform_indices = @transform_7, window_bounds = array<i64: 32, 512>}]} {
    %c0_i32 = arith.constant 0 : i32
    %0 = arith.cmpi eq, %arg1, %c0_i32 : i32
    %1 = arith.extui %0 : i1 to i32
    %c0_i32_0 = arith.constant 0 : i32
    %2 = arith.cmpi ne, %1, %c0_i32_0 : i32
    scf.if %2 {
      %cst_9 = arith.constant 0.000000e+00 : f32
      %12 = vector.broadcast %cst_9 : f32 to vector<32x128xf32>
      %c0_i32_10 = arith.constant 0 : i32
      %13 = arith.index_cast %c0_i32_10 : i32 to index
      %c0_11 = arith.constant 0 : index
      %c0_12 = arith.constant 0 : index
      %14 = vector.load %arg2[%13, %c0_11, %c0_12] : memref<4x32x12xbf16, #tpu.memory_space<vmem>>, vector<1x32x12xbf16>
      %15 = vector.shape_cast %14 : vector<1x32x12xbf16> to vector<32x12xbf16>
      %c0_13 = arith.constant 0 : index
      %c0_14 = arith.constant 0 : index
      %16 = vector.load %arg3[%c0_13, %c0_14] : memref<12x128xbf16, #tpu.memory_space<vmem>>, vector<12x128xbf16>
      %cst_15 = arith.constant dense<0.000000e+00> : vector<32x128xf32>
      %17 = tpu.matmul %15, %16, %cst_15 {dimension_numbers = #tpu.dot_dimension_numbers<[1], [0], [0], [1], [0, 0, 1, 1], [], []>} : vector<32x12xbf16>, vector<12x128xbf16>, vector<32x128xf32> -> vector<32x128xf32>
      %18 = arith.index_cast %c0_i32_10 : i32 to index
      %c0_16 = arith.constant 0 : index
      %c0_17 = arith.constant 0 : index
      %19 = vector.load %arg4[%18, %c0_16, %c0_17] : memref<4x1x128xf32, #tpu.memory_space<vmem>>, vector<1x1x128xf32>
      %20 = vector.shape_cast %19 : vector<1x1x128xf32> to vector<1x128xf32>
      %21 = vector.broadcast %20 : vector<1x128xf32> to vector<32x128xf32>
      %22 = arith.addf %17, %21 : vector<32x128xf32>
      %cst_18 = arith.constant 0.000000e+00 : f32
      %23 = vector.broadcast %cst_18 : f32 to vector<32x128xf32>
      %24 = arith.maximumf %22, %23 : vector<32x128xf32>
      %25 = arith.truncf %24 : vector<32x128xf32> to vector<32x128xbf16>
      %c0_19 = arith.constant 0 : index
      %c0_20 = arith.constant 0 : index
      %26 = vector.load %arg5[%c0_19, %c0_20] : memref<128x128xbf16, #tpu.memory_space<vmem>>, vector<128x128xbf16>
      %cst_21 = arith.constant dense<0.000000e+00> : vector<32x128xf32>
      %27 = tpu.matmul %25, %26, %cst_21 {dimension_numbers = #tpu.dot_dimension_numbers<[1], [0], [0], [1], [0, 0, 1, 1], [], []>} : vector<32x128xbf16>, vector<128x128xbf16>, vector<32x128xf32> -> vector<32x128xf32>
      %c0_22 = arith.constant 0 : index
      %c0_23 = arith.constant 0 : index
      %28 = vector.load %arg6[%c0_22, %c0_23] : memref<1x128xf32, #tpu.memory_space<vmem>>, vector<1x128xf32>
      %29 = vector.broadcast %28 : vector<1x128xf32> to vector<32x128xf32>
      %30 = arith.addf %27, %29 : vector<32x128xf32>
      %cst_24 = arith.constant 0.000000e+00 : f32
      %31 = vector.broadcast %cst_24 : f32 to vector<32x128xf32>
      %32 = arith.maximumf %30, %31 : vector<32x128xf32>
      %33 = arith.addf %12, %32 : vector<32x128xf32>
      %c1_i32 = arith.constant 1 : i32
      %34 = arith.index_cast %c1_i32 : i32 to index
      %c0_25 = arith.constant 0 : index
      %c0_26 = arith.constant 0 : index
      %35 = vector.load %arg2[%34, %c0_25, %c0_26] : memref<4x32x12xbf16, #tpu.memory_space<vmem>>, vector<1x32x12xbf16>
      %36 = vector.shape_cast %35 : vector<1x32x12xbf16> to vector<32x12xbf16>
      %c0_27 = arith.constant 0 : index
      %c0_28 = arith.constant 0 : index
      %37 = vector.load %arg3[%c0_27, %c0_28] : memref<12x128xbf16, #tpu.memory_space<vmem>>, vector<12x128xbf16>
      %cst_29 = arith.constant dense<0.000000e+00> : vector<32x128xf32>
      %38 = tpu.matmul %36, %37, %cst_29 {dimension_numbers = #tpu.dot_dimension_numbers<[1], [0], [0], [1], [0, 0, 1, 1], [], []>} : vector<32x12xbf16>, vector<12x128xbf16>, vector<32x128xf32> -> vector<32x128xf32>
      %39 = arith.index_cast %c1_i32 : i32 to index
      %c0_30 = arith.constant 0 : index
      %c0_31 = arith.constant 0 : index
      %40 = vector.load %arg4[%39, %c0_30, %c0_31] : memref<4x1x128xf32, #tpu.memory_space<vmem>>, vector<1x1x128xf32>
      %41 = vector.shape_cast %40 : vector<1x1x128xf32> to vector<1x128xf32>
      %42 = vector.broadcast %41 : vector<1x128xf32> to vector<32x128xf32>
      %43 = arith.addf %38, %42 : vector<32x128xf32>
      %cst_32 = arith.constant 0.000000e+00 : f32
      %44 = vector.broadcast %cst_32 : f32 to vector<32x128xf32>
      %45 = arith.maximumf %43, %44 : vector<32x128xf32>
      %46 = arith.truncf %45 : vector<32x128xf32> to vector<32x128xbf16>
      %c0_33 = arith.constant 0 : index
      %c0_34 = arith.constant 0 : index
      %47 = vector.load %arg5[%c0_33, %c0_34] : memref<128x128xbf16, #tpu.memory_space<vmem>>, vector<128x128xbf16>
      %cst_35 = arith.constant dense<0.000000e+00> : vector<32x128xf32>
      %48 = tpu.matmul %46, %47, %cst_35 {dimension_numbers = #tpu.dot_dimension_numbers<[1], [0], [0], [1], [0, 0, 1, 1], [], []>} : vector<32x128xbf16>, vector<128x128xbf16>, vector<32x128xf32> -> vector<32x128xf32>
      %c0_36 = arith.constant 0 : index
      %c0_37 = arith.constant 0 : index
      %49 = vector.load %arg6[%c0_36, %c0_37] : memref<1x128xf32, #tpu.memory_space<vmem>>, vector<1x128xf32>
      %50 = vector.broadcast %49 : vector<1x128xf32> to vector<32x128xf32>
      %51 = arith.addf %48, %50 : vector<32x128xf32>
      %cst_38 = arith.constant 0.000000e+00 : f32
      %52 = vector.broadcast %cst_38 : f32 to vector<32x128xf32>
      %53 = arith.maximumf %51, %52 : vector<32x128xf32>
      %54 = arith.addf %33, %53 : vector<32x128xf32>
      %c2_i32 = arith.constant 2 : i32
      %55 = arith.index_cast %c2_i32 : i32 to index
      %c0_39 = arith.constant 0 : index
      %c0_40 = arith.constant 0 : index
      %56 = vector.load %arg2[%55, %c0_39, %c0_40] : memref<4x32x12xbf16, #tpu.memory_space<vmem>>, vector<1x32x12xbf16>
      %57 = vector.shape_cast %56 : vector<1x32x12xbf16> to vector<32x12xbf16>
      %c0_41 = arith.constant 0 : index
      %c0_42 = arith.constant 0 : index
      %58 = vector.load %arg3[%c0_41, %c0_42] : memref<12x128xbf16, #tpu.memory_space<vmem>>, vector<12x128xbf16>
      %cst_43 = arith.constant dense<0.000000e+00> : vector<32x128xf32>
      %59 = tpu.matmul %57, %58, %cst_43 {dimension_numbers = #tpu.dot_dimension_numbers<[1], [0], [0], [1], [0, 0, 1, 1], [], []>} : vector<32x12xbf16>, vector<12x128xbf16>, vector<32x128xf32> -> vector<32x128xf32>
      %60 = arith.index_cast %c2_i32 : i32 to index
      %c0_44 = arith.constant 0 : index
      %c0_45 = arith.constant 0 : index
      %61 = vector.load %arg4[%60, %c0_44, %c0_45] : memref<4x1x128xf32, #tpu.memory_space<vmem>>, vector<1x1x128xf32>
      %62 = vector.shape_cast %61 : vector<1x1x128xf32> to vector<1x128xf32>
      %63 = vector.broadcast %62 : vector<1x128xf32> to vector<32x128xf32>
      %64 = arith.addf %59, %63 : vector<32x128xf32>
      %cst_46 = arith.constant 0.000000e+00 : f32
      %65 = vector.broadcast %cst_46 : f32 to vector<32x128xf32>
      %66 = arith.maximumf %64, %65 : vector<32x128xf32>
      %67 = arith.truncf %66 : vector<32x128xf32> to vector<32x128xbf16>
      %c0_47 = arith.constant 0 : index
      %c0_48 = arith.constant 0 : index
      %68 = vector.load %arg5[%c0_47, %c0_48] : memref<128x128xbf16, #tpu.memory_space<vmem>>, vector<128x128xbf16>
      %cst_49 = arith.constant dense<0.000000e+00> : vector<32x128xf32>
      %69 = tpu.matmul %67, %68, %cst_49 {dimension_numbers = #tpu.dot_dimension_numbers<[1], [0], [0], [1], [0, 0, 1, 1], [], []>} : vector<32x128xbf16>, vector<128x128xbf16>, vector<32x128xf32> -> vector<32x128xf32>
      %c0_50 = arith.constant 0 : index
      %c0_51 = arith.constant 0 : index
      %70 = vector.load %arg6[%c0_50, %c0_51] : memref<1x128xf32, #tpu.memory_space<vmem>>, vector<1x128xf32>
      %71 = vector.broadcast %70 : vector<1x128xf32> to vector<32x128xf32>
      %72 = arith.addf %69, %71 : vector<32x128xf32>
      %cst_52 = arith.constant 0.000000e+00 : f32
      %73 = vector.broadcast %cst_52 : f32 to vector<32x128xf32>
      %74 = arith.maximumf %72, %73 : vector<32x128xf32>
      %75 = arith.addf %54, %74 : vector<32x128xf32>
      %c3_i32 = arith.constant 3 : i32
      %76 = arith.index_cast %c3_i32 : i32 to index
      %c0_53 = arith.constant 0 : index
      %c0_54 = arith.constant 0 : index
      %77 = vector.load %arg2[%76, %c0_53, %c0_54] : memref<4x32x12xbf16, #tpu.memory_space<vmem>>, vector<1x32x12xbf16>
      %78 = vector.shape_cast %77 : vector<1x32x12xbf16> to vector<32x12xbf16>
      %c0_55 = arith.constant 0 : index
      %c0_56 = arith.constant 0 : index
      %79 = vector.load %arg3[%c0_55, %c0_56] : memref<12x128xbf16, #tpu.memory_space<vmem>>, vector<12x128xbf16>
      %cst_57 = arith.constant dense<0.000000e+00> : vector<32x128xf32>
      %80 = tpu.matmul %78, %79, %cst_57 {dimension_numbers = #tpu.dot_dimension_numbers<[1], [0], [0], [1], [0, 0, 1, 1], [], []>} : vector<32x12xbf16>, vector<12x128xbf16>, vector<32x128xf32> -> vector<32x128xf32>
      %81 = arith.index_cast %c3_i32 : i32 to index
      %c0_58 = arith.constant 0 : index
      %c0_59 = arith.constant 0 : index
      %82 = vector.load %arg4[%81, %c0_58, %c0_59] : memref<4x1x128xf32, #tpu.memory_space<vmem>>, vector<1x1x128xf32>
      %83 = vector.shape_cast %82 : vector<1x1x128xf32> to vector<1x128xf32>
      %84 = vector.broadcast %83 : vector<1x128xf32> to vector<32x128xf32>
      %85 = arith.addf %80, %84 : vector<32x128xf32>
      %cst_60 = arith.constant 0.000000e+00 : f32
      %86 = vector.broadcast %cst_60 : f32 to vector<32x128xf32>
      %87 = arith.maximumf %85, %86 : vector<32x128xf32>
      %88 = arith.truncf %87 : vector<32x128xf32> to vector<32x128xbf16>
      %c0_61 = arith.constant 0 : index
      %c0_62 = arith.constant 0 : index
      %89 = vector.load %arg5[%c0_61, %c0_62] : memref<128x128xbf16, #tpu.memory_space<vmem>>, vector<128x128xbf16>
      %cst_63 = arith.constant dense<0.000000e+00> : vector<32x128xf32>
      %90 = tpu.matmul %88, %89, %cst_63 {dimension_numbers = #tpu.dot_dimension_numbers<[1], [0], [0], [1], [0, 0, 1, 1], [], []>} : vector<32x128xbf16>, vector<128x128xbf16>, vector<32x128xf32> -> vector<32x128xf32>
      %c0_64 = arith.constant 0 : index
      %c0_65 = arith.constant 0 : index
      %91 = vector.load %arg6[%c0_64, %c0_65] : memref<1x128xf32, #tpu.memory_space<vmem>>, vector<1x128xf32>
      %92 = vector.broadcast %91 : vector<1x128xf32> to vector<32x128xf32>
      %93 = arith.addf %90, %92 : vector<32x128xf32>
      %cst_66 = arith.constant 0.000000e+00 : f32
      %94 = vector.broadcast %cst_66 : f32 to vector<32x128xf32>
      %95 = arith.maximumf %93, %94 : vector<32x128xf32>
      %96 = arith.addf %75, %95 : vector<32x128xf32>
      %c4_i32 = arith.constant 4 : i32
      %97 = arith.truncf %96 : vector<32x128xf32> to vector<32x128xbf16>
      %c0_67 = arith.constant 0 : index
      %c0_68 = arith.constant 0 : index
      %98 = vector.load %arg10[%c0_67, %c0_68] : memref<32x128xbf16, #tpu.memory_space<vmem>>, vector<32x128xbf16>
      tpu.vector_store %arg10[%c0_67, %c0_68], %97 {strides = array<i32>} : memref<32x128xbf16, #tpu.memory_space<vmem>>, vector<32x128xbf16>,
    } else {
    }
    %c0 = arith.constant 0 : index
    %c0_1 = arith.constant 0 : index
    %3 = vector.load %arg10[%c0, %c0_1] : memref<32x128xbf16, #tpu.memory_space<vmem>>, vector<32x128xbf16>
    %c0_2 = arith.constant 0 : index
    %c0_3 = arith.constant 0 : index
    %4 = vector.load %arg7[%c0_2, %c0_3] : memref<128x512xbf16, #tpu.memory_space<vmem>>, vector<128x512xbf16>
    %cst = arith.constant dense<0.000000e+00> : vector<32x512xf32>
    %5 = tpu.matmul %3, %4, %cst {dimension_numbers = #tpu.dot_dimension_numbers<[1], [0], [0], [1], [0, 0, 1, 1], [], []>} : vector<32x128xbf16>, vector<128x512xbf16>, vector<32x512xf32> -> vector<32x512xf32>
    %c0_4 = arith.constant 0 : index
    %c0_5 = arith.constant 0 : index
    %6 = vector.load %arg8[%c0_4, %c0_5] : memref<1x512xf32, #tpu.memory_space<vmem>>, vector<1x512xf32>
    %cst_6 = arith.constant 4.000000e+00 : f32
    %7 = vector.broadcast %cst_6 : f32 to vector<1x512xf32>
    %8 = arith.mulf %7, %6 : vector<1x512xf32>
    %9 = vector.broadcast %8 : vector<1x512xf32> to vector<32x512xf32>
    %10 = arith.addf %5, %9 : vector<32x512xf32>
    %c0_7 = arith.constant 0 : index
    %c0_8 = arith.constant 0 : index
    %11 = vector.load %arg9[%c0_7, %c0_8] : memref<32x512xf32, #tpu.memory_space<vmem>>, vector<32x512xf32>
    tpu.vector_store %arg9[%c0_7, %c0_8], %10 {strides = array<i32>} : memref<32x512xf32, #tpu.memory_space<vmem>>, vector<32x512xf32>,
    return
  }
  func.func @transform_0(%arg0: i32, %arg1: i32) -> (i32, i32, i32) {
    %c0_i32 = arith.constant 0 : i32
    %c0_i32_0 = arith.constant 0 : i32
    %c0_i32_1 = arith.constant 0 : i32
    return %c0_i32, %arg0, %c0_i32_0 : i32, i32, i32
  }
  func.func @transform_1(%arg0: i32, %arg1: i32) -> (i32, i32) {
    %c0_i32 = arith.constant 0 : i32
    %c0_i32_0 = arith.constant 0 : i32
    %c0_i32_1 = arith.constant 0 : i32
    return %c0_i32, %c0_i32_0 : i32, i32
  }
  func.func @transform_2(%arg0: i32, %arg1: i32) -> (i32, i32, i32) {
    %c0_i32 = arith.constant 0 : i32
    %c0_i32_0 = arith.constant 0 : i32
    %c0_i32_1 = arith.constant 0 : i32
    %c0_i32_2 = arith.constant 0 : i32
    return %c0_i32, %c0_i32_0, %c0_i32_1 : i32, i32, i32
  }
  func.func @transform_3(%arg0: i32, %arg1: i32) -> (i32, i32) {
    %c0_i32 = arith.constant 0 : i32
    %c0_i32_0 = arith.constant 0 : i32
    %c0_i32_1 = arith.constant 0 : i32
    return %c0_i32, %c0_i32_0 : i32, i32
  }
  func.func @transform_4(%arg0: i32, %arg1: i32) -> (i32, i32) {
    %c0_i32 = arith.constant 0 : i32
    %c0_i32_0 = arith.constant 0 : i32
    %c0_i32_1 = arith.constant 0 : i32
    return %c0_i32, %c0_i32_0 : i32, i32
  }
  func.func @transform_5(%arg0: i32, %arg1: i32) -> (i32, i32) {
    %c0_i32 = arith.constant 0 : i32
    %c0_i32_0 = arith.constant 0 : i32
    return %c0_i32, %arg1 : i32, i32
  }
  func.func @transform_6(%arg0: i32, %arg1: i32) -> (i32, i32) {
    %c0_i32 = arith.constant 0 : i32
    %c0_i32_0 = arith.constant 0 : i32
    return %c0_i32, %arg1 : i32, i32
  }
  func.func @transform_7(%arg0: i32, %arg1: i32) -> (i32, i32) {
    %c0_i32 = arith.constant 0 : i32
    return %arg0, %arg1 : i32, i32
  }
}

</mosaic_0001>

<llo_original>
// kernel: _lambda_.1
$region0: #{_lambda_.1}
  #allocation0 [shape = 'u32[]', space=smem, size = 0x4, offset = 0x4, fixed_abs, tag = 'smem constant byte address 0x4 - core index']
  #allocation1 [shape = 'u32[72,128]{1,0:T(1,128)}', space=vmem, size = 0x9000, scoped, tag = 'internal scratch']
  #allocation2 [shape = 'bf16[32,128]{1,0:T(8,128)(2,1)}', space=vmem, size = 0x2000, scoped, tag = 'scratch operand']
  %s0 = inlined_call_operand.vmem [shape: bf16[4,32,12], index: 0, kind: input, shape index: {}]
  %s1 = inlined_call_operand.vmem [shape: bf16[12,128], index: 1, kind: input, shape index: {}]
  %s2 = inlined_call_operand.vmem [shape: f32[4,1,128], index: 2, kind: input, shape index: {}]
  %s3 = inlined_call_operand.vmem [shape: bf16[128,128], index: 3, kind: input, shape index: {}]
  %s4 = inlined_call_operand.vmem [shape: f32[1,128], index: 4, kind: input, shape index: {}]
  %s5 = inlined_call_operand.hbm [shape: bf16[128,1024], index: 5, kind: input, shape index: {}]
  %s6 = inlined_call_operand.vmem [shape: f32[1,1024], index: 6, kind: input, shape index: {}]
  %s7 = inlined_call_operand.vmem [shape: f32[32,1024], index: 7, kind: output, shape index: {}]
  %s8 = sld [smem:[#allocation0]]
  $region88: #{_lambda_.1} parent=0
    _
  %s10 = ssub.s32 1, %s8
  %s11 = scalar_select 0, %s10, %s8
  $region1: #{_lambda_.1} parent=0
    #allocation3 [shape = 'u8[262144]{0}', space=vmem, size = 0x40000, scoped, tag = 'input window, operand 5']
    #allocation4 [shape = 's32[2]{0}', space=sflag, size = 0x8, scoped, tag = 'scoped memory for _lambda_.1']
    #allocation5 [shape = 'u8[131072]{0}', space=vmem, size = 0x20000, scoped, tag = 'output window, operand 0']
    %12 = vsyncpa [#allocation4], 0
    %s13 = scalar_lea.sflag [#allocation4], 1
    %14 = vsyncpa %s13, 0
    loop: start=0, step=1, limit=4
    $region2: #{_lambda_.1} parent=1 // loop_pre_header
      _
    $region3: #{_lambda_.1} parent=1 // loop_header
      %s16 = sphi 0, %s20
      %p17 = scmp.ge.s32.totalorder %s16, 4
      %s23 = sphi 0, %s35
      %s24 = sphi 0, %s31
      %s25 = sphi 0, %s23
      %s26 = sphi 0, %s24
      %s27 = sphi 0, %s25
      %s28 = sphi 0, %s26
      %s38 = sphi 0, %s40
      %s41 = sphi 0, %s38
      %s42 = sphi 0, %s41
      %s58 = sphi 0, %s42
      %s62 = sphi 0, %s62
      %s64 = sphi 0, %s62
      %s65 = sphi 0, %s64
      %s79 = sphi 0, %s65
      %s83 = sphi 0, %s83
      %s85 = sphi 0, %s83
      %s86 = sphi 0, %s85
      %s100 = sphi 0, %s86
      %s104 = sphi 0, %s104
      %s106 = sphi 0, %s104
      %s107 = sphi 0, %s106
      %s121 = sphi 0, %s107
      %s125 = sphi 0, %s125
      %s127 = sphi 0, %s125
      %s128 = sphi 0, %s127
      %s142 = sphi 0, %s128
      %s148 = sphi 0, %s150
      %s151 = sphi 0, %s148
      %s152 = sphi 0, %s151
      %s168 = sphi 0, %s152
      %s174 = sphi 0, %s176
      %s177 = sphi 0, %s174
      %s178 = sphi 0, %s177
      %s194 = sphi 0, %s178
      %s202 = sphi 0, %s204
      %s205 = sphi 0, %s202
      %s206 = sphi 0, %s205
      %s222 = sphi 0, %s206
    $region4: #{_lambda_.1} parent=1 // loop_header_branch
      %19 = sbr.rel (%p17) target = $region8
    $region5: #{_lambda_.1} parent=1 // loop_body
      %s21 = ssub.s32 %s16, 1
      %s22 = ssub.s32 %s16, 2
      %s29 = sadd.s32 1, %s24
      %p30 = scmp.ge.s32.totalorder %s29, 2
      %s31 = scalar_select %p30, 0, %s29
      %s32 = sadd.s32 1, %s23
      %s33 = scalar_select %p30, %s32, %s23
      %p34 = scmp.ge.s32.totalorder %s33, 1
      %s35 = scalar_select %p34, 0, %s33
      %s36 = ssub.s32 %s23, %s35
      %p37 = scmp.eq.s32.totalorder %s36, 0
      %s39 = sadd.s32 %s38, 1
      %s40 = scalar_select %p37, %s38, %s39
      %p43 = pneg %p37
      %p44 = scmp.eq.s32.totalorder %s16, 1
      %p45 = por %p43, %p44
      %p46 = scmp.ne.s32.totalorder %s38, %s41
      %p47 = scmp.eq.s32.totalorder %s16, 0
      %p48 = por %p46, %p47
      %p49 = scmp.ne.s32.totalorder %s38, %s41
      %p50 = scmp.eq.s32.totalorder %s21, 1
      %p51 = por %p49, %p50
      %p52 = scmp.ne.s32.totalorder %s41, %s42
      %p53 = scmp.eq.s32.totalorder %s21, 0
      %p54 = por %p52, %p53
      %p55 = scmp.ne.s32.totalorder %s41, %s42
      %p56 = scmp.eq.s32.totalorder %s22, 1
      %p57 = por %p55, %p56
      %p59 = scmp.ne.s32.totalorder %s42, %s58
      %p60 = scmp.eq.s32.totalorder %s22, 0
      %p61 = por %p59, %p60
      %s63 = sadd.s32 %s62, 1
      %p66 = scmp.eq.s32.totalorder %s16, 1
      %p67 = scmp.ne.s32.totalorder %s62, %s64
      %p68 = scmp.eq.s32.totalorder %s16, 0
      %p69 = por %p67, %p68
      %p70 = scmp.ne.s32.totalorder %s62, %s64
      %p71 = scmp.eq.s32.totalorder %s21, 1
      %p72 = por %p70, %p71
      %p73 = scmp.ne.s32.totalorder %s64, %s65
      %p74 = scmp.eq.s32.totalorder %s21, 0
      %p75 = por %p73, %p74
      %p76 = scmp.ne.s32.totalorder %s64, %s65
      %p77 = scmp.eq.s32.totalorder %s22, 1
      %p78 = por %p76, %p77
      %p80 = scmp.ne.s32.totalorder %s65, %s79
      %p81 = scmp.eq.s32.totalorder %s22, 0
      %p82 = por %p80, %p81
      %s84 = sadd.s32 %s83, 1
      %p87 = scmp.eq.s32.totalorder %s16, 1
      %p88 = scmp.ne.s32.totalorder %s83, %s85
      %p89 = scmp.eq.s32.totalorder %s16, 0
      %p90 = por %p88, %p89
      %p91 = scmp.ne.s32.totalorder %s83, %s85
      %p92 = scmp.eq.s32.totalorder %s21, 1
      %p93 = por %p91, %p92
      %p94 = scmp.ne.s32.totalorder %s85, %s86
      %p95 = scmp.eq.s32.totalorder %s21, 0
      %p96 = por %p94, %p95
      %p97 = scmp.ne.s32.totalorder %s85, %s86
      %p98 = scmp.eq.s32.totalorder %s22, 1
      %p99 = por %p97, %p98
      %p101 = scmp.ne.s32.totalorder %s86, %s100
      %p102 = scmp.eq.s32.totalorder %s22, 0
      %p103 = por %p101, %p102
      %s105 = sadd.s32 %s104, 1
      %p108 = scmp.eq.s32.totalorder %s16, 1
      %p109 = scmp.ne.s32.totalorder %s104, %s106
      %p110 = scmp.eq.s32.totalorder %s16, 0
      %p111 = por %p109, %p110
      %p112 = scmp.ne.s32.totalorder %s104, %s106
      %p113 = scmp.eq.s32.totalorder %s21, 1
      %p114 = por %p112, %p113
      %p115 = scmp.ne.s32.totalorder %s106, %s107
      %p116 = scmp.eq.s32.totalorder %s21, 0
      %p117 = por %p115, %p116
      %p118 = scmp.ne.s32.totalorder %s106, %s107
      %p119 = scmp.eq.s32.totalorder %s22, 1
      %p120 = por %p118, %p119
      %p122 = scmp.ne.s32.totalorder %s107, %s121
      %p123 = scmp.eq.s32.totalorder %s22, 0
      %p124 = por %p122, %p123
      %s126 = sadd.s32 %s125, 1
      %p129 = scmp.eq.s32.totalorder %s16, 1
      %p130 = scmp.ne.s32.totalorder %s125, %s127
      %p131 = scmp.eq.s32.totalorder %s16, 0
      %p132 = por %p130, %p131
      %p133 = scmp.ne.s32.totalorder %s125, %s127
      %p134 = scmp.eq.s32.totalorder %s21, 1
      %p135 = por %p133, %p134
      %p136 = scmp.ne.s32.totalorder %s127, %s128
      %p137 = scmp.eq.s32.totalorder %s21, 0
      %p138 = por %p136, %p137
      %p139 = scmp.ne.s32.totalorder %s127, %s128
      %p140 = scmp.eq.s32.totalorder %s22, 1
      %p141 = por %p139, %p140
      %p143 = scmp.ne.s32.totalorder %s128, %s142
      %p144 = scmp.eq.s32.totalorder %s22, 0
      %p145 = por %p143, %p144
      %s146 = ssub.s32 %s24, %s31
      %p147 = scmp.eq.s32.totalorder %s146, 0
      %s149 = sadd.s32 %s148, 1
      %s150 = scalar_select %p147, %s148, %s149
      %p153 = pneg %p147
      %p154 = scmp.eq.s32.totalorder %s16, 1
      %p155 = por %p153, %p154
      %p156 = scmp.ne.s32.totalorder %s148, %s151
      %p157 = scmp.eq.s32.totalorder %s16, 0
      %p158 = por %p156, %p157
      %p159 = scmp.ne.s32.totalorder %s148, %s151
      %p160 = scmp.eq.s32.totalorder %s21, 1
      %p161 = por %p159, %p160
      %p162 = scmp.ne.s32.totalorder %s151, %s152
      %p163 = scmp.eq.s32.totalorder %s21, 0
      %p164 = por %p162, %p163
      %p165 = scmp.ne.s32.totalorder %s151, %s152
      %p166 = scmp.eq.s32.totalorder %s22, 1
      %p167 = por %p165, %p166
      %p169 = scmp.ne.s32.totalorder %s152, %s168
      %p170 = scmp.eq.s32.totalorder %s22, 0
      %p171 = por %p169, %p170
      %s172 = ssub.s32 %s24, %s31
      %p173 = scmp.eq.s32.totalorder %s172, 0
      %s175 = sadd.s32 %s174, 1
      %s176 = scalar_select %p173, %s174, %s175
      %p179 = pneg %p173
      %p180 = scmp.eq.s32.totalorder %s16, 1
      %p181 = por %p179, %p180
      %p182 = scmp.ne.s32.totalorder %s174, %s177
      %p183 = scmp.eq.s32.totalorder %s16, 0
      %p184 = por %p182, %p183
      %p185 = scmp.ne.s32.totalorder %s174, %s177
      %p186 = scmp.eq.s32.totalorder %s21, 1
      %p187 = por %p185, %p186
      %p188 = scmp.ne.s32.totalorder %s177, %s178
      %p189 = scmp.eq.s32.totalorder %s21, 0
      %p190 = por %p188, %p189
      %p191 = scmp.ne.s32.totalorder %s177, %s178
      %p192 = scmp.eq.s32.totalorder %s22, 1
      %p193 = por %p191, %p192
      %p195 = scmp.ne.s32.totalorder %s178, %s194
      %p196 = scmp.eq.s32.totalorder %s22, 0
      %p197 = por %p195, %p196
      %s198 = ssub.s32 %s23, %s35
      %s199 = ssub.s32 %s24, %s31
      %s200 = sor.u32 %s198, %s199
      %p201 = scmp.eq.s32.totalorder %s200, 0
      %s203 = sadd.s32 %s202, 1
      %s204 = scalar_select %p201, %s202, %s203
      %p207 = pneg %p201
      %p208 = scmp.eq.s32.totalorder %s16, 1
      %p209 = por %p207, %p208
      %p210 = scmp.ne.s32.totalorder %s202, %s205
      %p211 = scmp.eq.s32.totalorder %s16, 0
      %p212 = por %p210, %p211
      %p213 = scmp.ne.s32.totalorder %s202, %s205
      %p214 = scmp.eq.s32.totalorder %s21, 1
      %p215 = por %p213, %p214
      %p216 = scmp.ne.s32.totalorder %s205, %s206
      %p217 = scmp.eq.s32.totalorder %s21, 0
      %p218 = por %p216, %p217
      %p219 = scmp.ne.s32.totalorder %s205, %s206
      %p220 = scmp.eq.s32.totalorder %s22, 1
      %p221 = por %p219, %p220
      %p223 = scmp.ne.s32.totalorder %s206, %s222
      %p224 = scmp.eq.s32.totalorder %s22, 0
      %p225 = por %p223, %p224
      %p226 = scmp.le.s32.totalorder 1, %s16
      %p227 = scmp.lt.s32.totalorder %s16, 3
      %p228 = pnand %p226, %p227
      %p229 = pneg %p228
      // Predicated region
      $region9: #{_lambda_.1} parent=5 // pred_check
        _
      $region10: #{_lambda_.1} parent=5 // pred_check_branch
        %231 = sbr.rel (%p228) target = $region12
      $region11: #{_lambda_.1} parent=5 // pred_region
        %s232 = ssub.s32 %s16, 1
        // Predicated region
        $region13: #{_lambda_.1} parent=11 // pred_check
          %p233 = pneg %p54
        $region14: #{_lambda_.1} parent=11 // pred_check_branch
          %235 = sbr.rel (%p233) target = $region16
        $region15: #{_lambda_.1} parent=11 // pred_region
          %s236 = smul.u32 4, %s25
          %p237 = scmp.lt.s32.totalorder %s236, 3
          %s238 = scalar_select %p237, %s236, 3
          %s239 = smul.addr %s238, 4
          %s240 = scalar_lea.vmem %s0, %s239
          %s241 = smul.u32 4, %s25
        $region16: #{_lambda_.1} parent=11 // pred_fallthru
          _
        // Predicated region
        $region17: #{_lambda_.1} parent=11 // pred_check
          %p242 = pneg %p75
        $region18: #{_lambda_.1} parent=11 // pred_check_branch
          %244 = sbr.rel (%p242) target = $region20
        $region19: #{_lambda_.1} parent=11 // pred_region
          _
        $region20: #{_lambda_.1} parent=11 // pred_fallthru
          _
        // Predicated region
        $region21: #{_lambda_.1} parent=11 // pred_check
          %p245 = pneg %p96
        $region22: #{_lambda_.1} parent=11 // pred_check_branch
          %247 = sbr.rel (%p245) target = $region24
        $region23: #{_lambda_.1} parent=11 // pred_region
          _
        $region24: #{_lambda_.1} parent=11 // pred_fallthru
          _
        // Predicated region
        $region25: #{_lambda_.1} parent=11 // pred_check
          %p248 = pneg %p117
        $region26: #{_lambda_.1} parent=11 // pred_check_branch
          %250 = sbr.rel (%p248) target = $region28
        $region27: #{_lambda_.1} parent=11 // pred_region
          _
        $region28: #{_lambda_.1} parent=11 // pred_fallthru
          _
        // Predicated region
        $region29: #{_lambda_.1} parent=11 // pred_check
          %p251 = pneg %p138
        $region30: #{_lambda_.1} parent=11 // pred_check_branch
          %253 = sbr.rel (%p251) target = $region32
        $region31: #{_lambda_.1} parent=11 // pred_region
          _
        $region32: #{_lambda_.1} parent=11 // pred_fallthru
          _
      $region12: #{_lambda_.1} parent=5 // pred_fallthru
        _
      %p254 = scmp.lt.s32.totalorder %s16, 2
      // Predicated region
      $region33: #{_lambda_.1} parent=5 // pred_check
        %p255 = pneg %p254
      $region34: #{_lambda_.1} parent=5 // pred_check_branch
        %257 = sbr.rel (%p255) target = $region36
      $region35: #{_lambda_.1} parent=5 // pred_region
        // Predicated region
        $region37: #{_lambda_.1} parent=35 // pred_check
          %p258 = pneg %p158
        $region38: #{_lambda_.1} parent=35 // pred_check_branch
          %260 = sbr.rel (%p258) target = $region40
        $region39: #{_lambda_.1} parent=35 // pred_region
          %s261 = sand.u32 %s148, 1
          %s262 = scalar_lea.sflag [#allocation4], %s261
          %s263 = sand.u32 %s148, 1
          %s264 = smul.addr %s263, 256
          %s265 = scalar_lea.vmem [#allocation3], %s264
          %s266 = smul.u32 4, %s24
          %268 = vsyncadd %s262, 0
          %s269 = smul.addr %s266, 4
          %s270 = scalar_lea.hbm %s5, %s269
          %s271 = sshll.u32 %s270, 4
          %s272 = int_to_ptr.hbm [resolvable:$true] %s271
          %s273 = sshll.u32 %s265, 4
          %s274 = int_to_ptr.vmem [resolvable:$true] %s273
          %279 = dma.hbm_to_vmem [thread:$0]  %s272, 4096, %s274, %s262, 512, 256, 16
        $region40: #{_lambda_.1} parent=35 // pred_fallthru
          _
        // Predicated region
        $region41: #{_lambda_.1} parent=35 // pred_check
          %p280 = pneg %p184
        $region42: #{_lambda_.1} parent=35 // pred_check_branch
          %282 = sbr.rel (%p280) target = $region44
        $region43: #{_lambda_.1} parent=35 // pred_region
          %s283 = smul.u32 4, %s24
          %p284 = scmp.lt.s32.totalorder %s283, 7
          %s285 = scalar_select %p284, %s283, 7
          %s286 = scalar_lea.vmem %s6, %s285
          %s287 = smul.u32 4, %s24
        $region44: #{_lambda_.1} parent=35 // pred_fallthru
          _
      $region36: #{_lambda_.1} parent=5 // pred_fallthru
        _
      %p288 = scmp.le.s32.totalorder 1, %s16
      %p289 = scmp.lt.s32.totalorder %s16, 3
      %p290 = pnand %p288, %p289
      %p291 = pneg %p290
      // Predicated region
      $region45: #{_lambda_.1} parent=5 // pred_check
        _
      $region46: #{_lambda_.1} parent=5 // pred_check_branch
        %293 = sbr.rel (%p290) target = $region48
      $region47: #{_lambda_.1} parent=5 // pred_region
        %s294 = ssub.s32 %s16, 1
        %s295 = sand.u32 %s151, 1
        %s296 = scalar_lea.sflag [#allocation4], %s295
        %s297 = sand.u32 %s151, 1
        %s298 = smul.addr %s297, 256
        %s299 = scalar_lea.vmem [#allocation3], %s298
        // Predicated region
        $region49: #{_lambda_.1} parent=47 // pred_check
          %p300 = pneg %p164
        $region50: #{_lambda_.1} parent=47 // pred_check_branch
          %302 = sbr.rel (%p300) target = $region52
        $region51: #{_lambda_.1} parent=47 // pred_region
          %304 = dma.done %s296, 4096
        $region52: #{_lambda_.1} parent=47 // pred_fallthru
          _
        %s305 = smul.u32 4, %s25
        %p306 = scmp.lt.s32.totalorder %s305, 3
        %s307 = scalar_select %p306, %s305, 3
        %s308 = smul.addr %s307, 4
        %s309 = scalar_lea.vmem %s0, %s308
        %p310 = pneg %p54
        %p311 = pneg %p51
        %p312 = pneg %p75
        %p313 = pneg %p72
        %p314 = pneg %p96
        %p315 = pneg %p93
        %p316 = pneg %p117
        %p317 = pneg %p114
        %p318 = pneg %p138
        %p319 = pneg %p135
        %s320 = sand.u32 %s151, 1
        %s321 = scalar_lea.sflag [#allocation4], %s320
        %s322 = sand.u32 %s151, 1
        %s323 = smul.addr %s322, 256
        %s324 = scalar_lea.vmem [#allocation3], %s323
        %p325 = pneg %p164
        %p326 = pneg %p161
        %s327 = smul.u32 4, %s26
        %p328 = scmp.lt.s32.totalorder %s327, 7
        %s329 = scalar_select %p328, %s327, 7
        %s330 = scalar_lea.vmem %s6, %s329
        %p331 = pneg %p190
        %p332 = pneg %p187
        %p333 = pneg %p218
        %p334 = pneg %p215
        %s335 = sand.u32 %s205, 1
        %s336 = sand.u32 %s205, 1
        %s337 = smul.addr %s336, 128
        %s338 = scalar_lea.vmem [#allocation5], %s337
        %s339 = smul.u32 4, %s25
        %p340 = scmp.lt.s32.totalorder %s339, 3
        %s341 = scalar_select %p340, %s339, 3
        %s342 = smul.addr %s341, 4
        %s343 = scalar_lea.vmem %s0, %s342
        %s344 = smul.u32 4, %s25
        %s345 = smul.u32 4, %s26
        %s346 = smul.u32 4, %s26
        %p347 = scmp.lt.s32.totalorder %s346, 7
        %s348 = scalar_select %p347, %s346, 7
        %s349 = scalar_lea.vmem %s6, %s348
        %s350 = smul.u32 4, %s26
        %s351 = smul.u32 4, %s25
        %s352 = smul.u32 4, %s26
        %p354 = scmp.eq.s32.totalorder %s26, 0
        // Predicated region
        $region53: #{_lambda_.1} parent=47 // pred_check
          %p355 = pneg %p354
        $region54: #{_lambda_.1} parent=47 // pred_check_branch
          %357 = sbr.rel (%p355) target = $region56
        $region55: #{_lambda_.1} parent=47 // pred_region
          %v358 = vld [vmem:[%s343] sm:$0xf]
          %v359 = vld [vmem:[%s343 + $0x4] sm:$0xf]
          %v360 = vld [vmem:[%s343 + $0x8] sm:$0xf]
          %v361 = vld [vmem:[%s343 + $0xc] sm:$0xf]
          %v362 = vld [vmem:[%s1] sm:$0xf]
          %v363 = vld [vmem:[%s1 + $0x4] sm:$0x3]
          %v364 = vld [vmem:[%s2] sm:$0x1]
          %v366 = vperm.slane %v364, 0
          %v372 = vunpack.c.l.b16 %v358
          %v373 = vunpack.c.l.b16 %v359
          %v374 = vunpack.c.l.b16 %v360
          %v375 = vunpack.c.l.b16 %v361
          %v376 = vpack.c.b16 %v373, %v372
          %v377 = vpack.c.b16 %v375, %v374
          %v380 = vunpack.c.l.b16 %v362
          %v381 = vunpack.c.l.b16 %v363
          %v382 = vpack.c.b16 %v381, %v380
          %vm383 = vcmask 97280
          %v385 = vsel %vm383, %v376, 0
          %v388 = vsel %vm383, %v377, 0
          %vm390 = vcmask 1045504
          %v392 = vsel %vm390, %v382, 0
          %394 = vmatpush.bf16.msra.mxu0 0
          %395 = vmatpush.bf16.msra.mxu0 0
          %396 = vmatpush.bf16.msra.mxu0 0
          %397 = vmatpush.bf16.msra.mxu0 0
          %398 = vmatpush.bf16.msra.mxu0 0
          %399 = vmatpush.bf16.msra.mxu0 0
          %400 = vmatpush.bf16.msra.mxu0 0
          %401 = vmatpush.bf16.msra.mxu0 %v392
          %402 = vmatmul.bf16.gmra.mxu0 %v385
          %v403 = vpop.f32.mrf.mxu0
          %v404 = vadd.f32 %v366, %v403
          %v405 = vpop.f32.mrf.mxu0
          %v406 = vadd.f32 %v366, %v405
          %407 = vmatmul.bf16.gmra.mxu0 %v388
          %v408 = vpop.f32.mrf.mxu0
          %v409 = vadd.f32 %v366, %v408
          %v410 = vpop.f32.mrf.mxu0
          %v411 = vadd.f32 %v366, %v410
          %412 = vdwg.mxu0
          %v413 = vmax.f32 %v404, 0.0
          %v414 = vmax.f32 %v406, 0.0
          %v415 = vmax.f32 %v409, 0.0
          %v416 = vmax.f32 %v411, 0.0
          %v417 = vpack.c.bf16 %v414, %v413
          %v418 = vpack.c.bf16 %v416, %v415
          %v419 = vld [vmem:[%s3] sm:$0xf]
          %v420 = vld [vmem:[%s3 + $0x4] sm:$0xf]
          %v421 = vld [vmem:[%s3 + $0x8] sm:$0xf]
          %v422 = vld [vmem:[%s3 + $0xc] sm:$0xf]
          %v423 = vld [vmem:[%s3 + $0x10] sm:$0xf]
          %v424 = vld [vmem:[%s3 + $0x14] sm:$0xf]
          %v425 = vld [vmem:[%s3 + $0x18] sm:$0xf]
          %v426 = vld [vmem:[%s3 + $0x1c] sm:$0xf]
          %v427 = vld [vmem:[%s3 + $0x20] sm:$0xf]
          %v428 = vld [vmem:[%s3 + $0x24] sm:$0xf]
          %v429 = vld [vmem:[%s3 + $0x28] sm:$0xf]
          %v430 = vld [vmem:[%s3 + $0x2c] sm:$0xf]
          %v431 = vld [vmem:[%s3 + $0x30] sm:$0xf]
          %v432 = vld [vmem:[%s3 + $0x34] sm:$0xf]
          %v433 = vld [vmem:[%s3 + $0x38] sm:$0xf]
          %v434 = vld [vmem:[%s3 + $0x3c] sm:$0xf]
          %v435 = vld [vmem:[%s4] sm:$0x1]
          %v437 = vperm.slane %v435, 0
          %v455 = vunpack.c.l.b16 %v419
          %v456 = vunpack.c.l.b16 %v420
          %v457 = vunpack.c.l.b16 %v421
          %v458 = vunpack.c.l.b16 %v422
          %v459 = vunpack.c.l.b16 %v423
          %v460 = vunpack.c.l.b16 %v424
          %v461 = vunpack.c.l.b16 %v425
          %v462 = vunpack.c.l.b16 %v426
          %v463 = vunpack.c.l.b16 %v427
          %v464 = vunpack.c.l.b16 %v428
          %v465 = vunpack.c.l.b16 %v429
          %v466 = vunpack.c.l.b16 %v430
          %v467 = vunpack.c.l.b16 %v431
          %v468 = vunpack.c.l.b16 %v432
          %v469 = vunpack.c.l.b16 %v433
          %v470 = vunpack.c.l.b16 %v434
          %v471 = vpack.c.b16 %v456, %v455
          %v472 = vpack.c.b16 %v458, %v457
          %v473 = vpack.c.b16 %v460, %v459
          %v474 = vpack.c.b16 %v462, %v461
          %v475 = vpack.c.b16 %v464, %v463
          %v476 = vpack.c.b16 %v466, %v465
          %v477 = vpack.c.b16 %v468, %v467
          %v478 = vpack.c.b16 %v470, %v469
          %487 = vmatpush.bf16.msra.mxu0 %v478
          %488 = vmatpush.bf16.msra.mxu0 %v477
          %489 = vmatpush.bf16.msra.mxu0 %v476
          %490 = vmatpush.bf16.msra.mxu0 %v475
          %491 = vmatpush.bf16.msra.mxu0 %v474
          %492 = vmatpush.bf16.msra.mxu0 %v473
          %493 = vmatpush.bf16.msra.mxu0 %v472
          %494 = vmatpush.bf16.msra.mxu0 %v471
          %495 = vmatmul.bf16.gmra.mxu0 %v417
          %v496 = vpop.f32.mrf.mxu0
          %v497 = vadd.f32 %v437, %v496
          %v498 = vpop.f32.mrf.mxu0
          %v499 = vadd.f32 %v437, %v498
          %500 = vmatmul.bf16.gmra.mxu0 %v418
          %v501 = vpop.f32.mrf.mxu0
          %v502 = vadd.f32 %v437, %v501
          %v503 = vpop.f32.mrf.mxu0
          %v504 = vadd.f32 %v437, %v503
          %505 = vdwg.mxu0
          %v506 = vmax.f32 %v497, 0.0
          %v507 = vmax.f32 %v499, 0.0
          %v508 = vmax.f32 %v502, 0.0
          %v509 = vmax.f32 %v504, 0.0
          %v510 = vadd.f32 %v506, 0.0
          %v511 = vadd.f32 %v507, 0.0
          %v512 = vadd.f32 %v508, 0.0
          %v513 = vadd.f32 %v509, 0.0
          %s514 = scalar_lea.vmem %s343, 16
          %v515 = vld [vmem:[%s514] sm:$0xf]
          %v516 = vld [vmem:[%s514 + $0x4] sm:$0xf]
          %v517 = vld [vmem:[%s514 + $0x8] sm:$0xf]
          %v518 = vld [vmem:[%s514 + $0xc] sm:$0xf]
          %s519 = scalar_lea.vmem %s2, 1
          %v520 = vld [vmem:[%s519] sm:$0x1]
          %v522 = vperm.slane %v520, 0
          %v528 = vunpack.c.l.b16 %v515
          %v529 = vunpack.c.l.b16 %v516
          %v530 = vunpack.c.l.b16 %v517
          %v531 = vunpack.c.l.b16 %v518
          %v532 = vpack.c.b16 %v529, %v528
          %v533 = vpack.c.b16 %v531, %v530
          %v535 = vsel %vm383, %v532, 0
          %v538 = vsel %vm383, %v533, 0
          %540 = vmatpush.bf16.msra.mxu0 0
          %541 = vmatpush.bf16.msra.mxu0 0
          %542 = vmatpush.bf16.msra.mxu0 0
          %543 = vmatpush.bf16.msra.mxu0 0
          %544 = vmatpush.bf16.msra.mxu0 0
          %545 = vmatpush.bf16.msra.mxu0 0
          %546 = vmatpush.bf16.msra.mxu0 0
          %547 = vmatpush.bf16.msra.mxu0 %v392
          %548 = vmatmul.bf16.gmra.mxu0 %v535
          %v549 = vpop.f32.mrf.mxu0
          %v550 = vadd.f32 %v522, %v549
          %v551 = vpop.f32.mrf.mxu0
          %v552 = vadd.f32 %v522, %v551
          %553 = vmatmul.bf16.gmra.mxu0 %v538
          %v554 = vpop.f32.mrf.mxu0
          %v555 = vadd.f32 %v522, %v554
          %v556 = vpop.f32.mrf.mxu0
          %v557 = vadd.f32 %v522, %v556
          %558 = vdwg.mxu0
          %v559 = vmax.f32 %v550, 0.0
          %v560 = vmax.f32 %v552, 0.0
          %v561 = vmax.f32 %v555, 0.0
          %v562 = vmax.f32 %v557, 0.0
          %v563 = vpack.c.bf16 %v560, %v559
          %v564 = vpack.c.bf16 %v562, %v561
          %565 = vmatpush.bf16.msra.mxu0 %v478
          %566 = vmatpush.bf16.msra.mxu0 %v477
          %567 = vmatpush.bf16.msra.mxu0 %v476
          %568 = vmatpush.bf16.msra.mxu0 %v475
          %569 = vmatpush.bf16.msra.mxu0 %v474
          %570 = vmatpush.bf16.msra.mxu0 %v473
          %571 = vmatpush.bf16.msra.mxu0 %v472
          %572 = vmatpush.bf16.msra.mxu0 %v471
          %573 = vmatmul.bf16.gmra.mxu0 %v563
          %v574 = vpop.f32.mrf.mxu0
          %v575 = vadd.f32 %v437, %v574
          %v576 = vpop.f32.mrf.mxu0
          %v577 = vadd.f32 %v437, %v576
          %578 = vmatmul.bf16.gmra.mxu0 %v564
          %v579 = vpop.f32.mrf.mxu0
          %v580 = vadd.f32 %v437, %v579
          %v581 = vpop.f32.mrf.mxu0
          %v582 = vadd.f32 %v437, %v581
          %583 = vdwg.mxu0
          %v584 = vmax.f32 %v575, 0.0
          %v585 = vmax.f32 %v577, 0.0
          %v586 = vmax.f32 %v580, 0.0
          %v587 = vmax.f32 %v582, 0.0
          %v588 = vadd.f32 %v510, %v584
          %v589 = vadd.f32 %v511, %v585
          %v590 = vadd.f32 %v512, %v586
          %v591 = vadd.f32 %v513, %v587
          %s592 = scalar_lea.vmem %s343, 32
          %v593 = vld [vmem:[%s592] sm:$0xf]
          %v594 = vld [vmem:[%s592 + $0x4] sm:$0xf]
          %v595 = vld [vmem:[%s592 + $0x8] sm:$0xf]
          %v596 = vld [vmem:[%s592 + $0xc] sm:$0xf]
          %s597 = scalar_lea.vmem %s2, 2
          %v598 = vld [vmem:[%s597] sm:$0x1]
          %v600 = vperm.slane %v598, 0
          %v606 = vunpack.c.l.b16 %v593
          %v607 = vunpack.c.l.b16 %v594
          %v608 = vunpack.c.l.b16 %v595
          %v609 = vunpack.c.l.b16 %v596
          %v610 = vpack.c.b16 %v607, %v606
          %v611 = vpack.c.b16 %v609, %v608
          %v613 = vsel %vm383, %v610, 0
          %v616 = vsel %vm383, %v611, 0
          %618 = vmatpush.bf16.msra.mxu0 0
          %619 = vmatpush.bf16.msra.mxu0 0
          %620 = vmatpush.bf16.msra.mxu0 0
          %621 = vmatpush.bf16.msra.mxu0 0
          %622 = vmatpush.bf16.msra.mxu0 0
          %623 = vmatpush.bf16.msra.mxu0 0
          %624 = vmatpush.bf16.msra.mxu0 0
          %625 = vmatpush.bf16.msra.mxu0 %v392
          %626 = vmatmul.bf16.gmra.mxu0 %v613
          %v627 = vpop.f32.mrf.mxu0
          %v628 = vadd.f32 %v600, %v627
          %v629 = vpop.f32.mrf.mxu0
          %v630 = vadd.f32 %v600, %v629
          %631 = vmatmul.bf16.gmra.mxu0 %v616
          %v632 = vpop.f32.mrf.mxu0
          %v633 = vadd.f32 %v600, %v632
          %v634 = vpop.f32.mrf.mxu0
          %v635 = vadd.f32 %v600, %v634
          %636 = vdwg.mxu0
          %v637 = vmax.f32 %v628, 0.0
          %v638 = vmax.f32 %v630, 0.0
          %v639 = vmax.f32 %v633, 0.0
          %v640 = vmax.f32 %v635, 0.0
          %v641 = vpack.c.bf16 %v638, %v637
          %v642 = vpack.c.bf16 %v640, %v639
          %643 = vmatpush.bf16.msra.mxu0 %v478
          %644 = vmatpush.bf16.msra.mxu0 %v477
          %645 = vmatpush.bf16.msra.mxu0 %v476
          %646 = vmatpush.bf16.msra.mxu0 %v475
          %647 = vmatpush.bf16.msra.mxu0 %v474
          %648 = vmatpush.bf16.msra.mxu0 %v473
          %649 = vmatpush.bf16.msra.mxu0 %v472
          %650 = vmatpush.bf16.msra.mxu0 %v471
          %651 = vmatmul.bf16.gmra.mxu0 %v641
          %v652 = vpop.f32.mrf.mxu0
          %v653 = vadd.f32 %v437, %v652
          %v654 = vpop.f32.mrf.mxu0
          %v655 = vadd.f32 %v437, %v654
          %656 = vmatmul.bf16.gmra.mxu0 %v642
          %v657 = vpop.f32.mrf.mxu0
          %v658 = vadd.f32 %v437, %v657
          %v659 = vpop.f32.mrf.mxu0
          %v660 = vadd.f32 %v437, %v659
          %661 = vdwg.mxu0
          %v662 = vmax.f32 %v653, 0.0
          %v663 = vmax.f32 %v655, 0.0
          %v664 = vmax.f32 %v658, 0.0
          %v665 = vmax.f32 %v660, 0.0
          %v666 = vadd.f32 %v588, %v662
          %v667 = vadd.f32 %v589, %v663
          %v668 = vadd.f32 %v590, %v664
          %v669 = vadd.f32 %v591, %v665
          %s670 = scalar_lea.vmem %s343, 48
          %v671 = vld [vmem:[%s670] sm:$0xf]
          %v672 = vld [vmem:[%s670 + $0x4] sm:$0xf]
          %v673 = vld [vmem:[%s670 + $0x8] sm:$0xf]
          %v674 = vld [vmem:[%s670 + $0xc] sm:$0xf]
          %s675 = scalar_lea.vmem %s2, 3
          %v676 = vld [vmem:[%s675] sm:$0x1]
          %v678 = vperm.slane %v676, 0
          %v684 = vunpack.c.l.b16 %v671
          %v685 = vunpack.c.l.b16 %v672
          %v686 = vunpack.c.l.b16 %v673
          %v687 = vunpack.c.l.b16 %v674
          %v688 = vpack.c.b16 %v685, %v684
          %v689 = vpack.c.b16 %v687, %v686
          %v691 = vsel %vm383, %v688, 0
          %v694 = vsel %vm383, %v689, 0
          %696 = vmatpush.bf16.msra.mxu0 0
          %697 = vmatpush.bf16.msra.mxu0 0
          %698 = vmatpush.bf16.msra.mxu0 0
          %699 = vmatpush.bf16.msra.mxu0 0
          %700 = vmatpush.bf16.msra.mxu0 0
          %701 = vmatpush.bf16.msra.mxu0 0
          %702 = vmatpush.bf16.msra.mxu0 0
          %703 = vmatpush.bf16.msra.mxu0 %v392
          %704 = vmatmul.bf16.gmra.mxu0 %v691
          %v705 = vpop.f32.mrf.mxu0
          %v706 = vadd.f32 %v678, %v705
          %v707 = vpop.f32.mrf.mxu0
          %v708 = vadd.f32 %v678, %v707
          %709 = vmatmul.bf16.gmra.mxu0 %v694
          %v710 = vpop.f32.mrf.mxu0
          %v711 = vadd.f32 %v678, %v710
          %v712 = vpop.f32.mrf.mxu0
          %v713 = vadd.f32 %v678, %v712
          %714 = vdwg.mxu0
          %v715 = vmax.f32 %v706, 0.0
          %v716 = vmax.f32 %v708, 0.0
          %v717 = vmax.f32 %v711, 0.0
          %v718 = vmax.f32 %v713, 0.0
          %v719 = vpack.c.bf16 %v716, %v715
          %v720 = vpack.c.bf16 %v718, %v717
          %721 = vmatpush.bf16.msra.mxu0 %v478
          %722 = vmatpush.bf16.msra.mxu0 %v477
          %723 = vmatpush.bf16.msra.mxu0 %v476
          %724 = vmatpush.bf16.msra.mxu0 %v475
          %725 = vmatpush.bf16.msra.mxu0 %v474
          %726 = vmatpush.bf16.msra.mxu0 %v473
          %727 = vmatpush.bf16.msra.mxu0 %v472
          %728 = vmatpush.bf16.msra.mxu0 %v471
          %729 = vmatmul.bf16.gmra.mxu0 %v719
          %v730 = vpop.f32.mrf.mxu0
          %v731 = vadd.f32 %v437, %v730
          %v732 = vpop.f32.mrf.mxu0
          %v733 = vadd.f32 %v437, %v732
          %734 = vmatmul.bf16.gmra.mxu0 %v720
          %v735 = vpop.f32.mrf.mxu0
          %v736 = vadd.f32 %v437, %v735
          %v737 = vpop.f32.mrf.mxu0
          %v738 = vadd.f32 %v437, %v737
          %739 = vdwg.mxu0
          %v740 = vmax.f32 %v731, 0.0
          %v741 = vmax.f32 %v733, 0.0
          %v742 = vmax.f32 %v736, 0.0
          %v743 = vmax.f32 %v738, 0.0
          %v744 = vadd.f32 %v666, %v740
          %v745 = vadd.f32 %v667, %v741
          %v746 = vadd.f32 %v668, %v742
          %v747 = vadd.f32 %v669, %v743
          %v748 = vpack.c.bf16 %v744, %v744
          %v749 = vpack.c.bf16 %v745, %v745
          %v750 = vpack.c.bf16 %v746, %v746
          %v751 = vpack.c.bf16 %v747, %v747
          %752 = vst [vmem:[#allocation2] sm:$0xf] %v748
          %753 = vst [vmem:[#allocation2 + $0x4] sm:$0xf] %v749
          %754 = vst [vmem:[#allocation2 + $0x8] sm:$0xf] %v750
          %755 = vst [vmem:[#allocation2 + $0xc] sm:$0xf] %v751
        $region56: #{_lambda_.1} parent=47 // pred_fallthru
          _
        %v756 = vld [vmem:[#allocation2] sm:$0xf]
        %v757 = vld [vmem:[#allocation2 + $0x4] sm:$0xf]
        %v758 = vld [vmem:[#allocation2 + $0x8] sm:$0xf]
        %v759 = vld [vmem:[#allocation2 + $0xc] sm:$0xf]
        %v760 = vld [vmem:[%s299] sm:$0xff]
        %v761 = vld [vmem:[%s299 + $0x8] sm:$0xff]
        %v762 = vld [vmem:[%s299 + $0x10] sm:$0xff]
        %v763 = vld [vmem:[%s299 + $0x18] sm:$0xff]
        %v764 = vld [vmem:[%s299 + $0x20] sm:$0xff]
        %v765 = vld [vmem:[%s299 + $0x28] sm:$0xff]
        %v766 = vld [vmem:[%s299 + $0x30] sm:$0xff]
        %v767 = vld [vmem:[%s299 + $0x38] sm:$0xff]
        %v768 = vld [vmem:[%s299 + $0x40] sm:$0xff]
        %v769 = vld [vmem:[%s299 + $0x48] sm:$0xff]
        %v770 = vld [vmem:[%s299 + $0x50] sm:$0xff]
        %v771 = vld [vmem:[%s299 + $0x58] sm:$0xff]
        %v772 = vld [vmem:[%s299 + $0x60] sm:$0xff]
        %v773 = vld [vmem:[%s299 + $0x68] sm:$0xff]
        %v774 = vld [vmem:[%s299 + $0x70] sm:$0xff]
        %v775 = vld [vmem:[%s299 + $0x78] sm:$0xff]
        %v776 = vld [vmem:[%s299 + $0x80] sm:$0xff]
        %v777 = vld [vmem:[%s299 + $0x88] sm:$0xff]
        %v778 = vld [vmem:[%s299 + $0x90] sm:$0xff]
        %v779 = vld [vmem:[%s299 + $0x98] sm:$0xff]
        %v780 = vld [vmem:[%s299 + $0xa0] sm:$0xff]
        %v781 = vld [vmem:[%s299 + $0xa8] sm:$0xff]
        %v782 = vld [vmem:[%s299 + $0xb0] sm:$0xff]
        %v783 = vld [vmem:[%s299 + $0xb8] sm:$0xff]
        %v784 = vld [vmem:[%s299 + $0xc0] sm:$0xff]
        %v785 = vld [vmem:[%s299 + $0xc8] sm:$0xff]
        %v786 = vld [vmem:[%s299 + $0xd0] sm:$0xff]
        %v787 = vld [vmem:[%s299 + $0xd8] sm:$0xff]
        %v788 = vld [vmem:[%s299 + $0xe0] sm:$0xff]
        %v789 = vld [vmem:[%s299 + $0xe8] sm:$0xff]
        %v790 = vld [vmem:[%s299 + $0xf0] sm:$0xff]
        %v791 = vld [vmem:[%s299 + $0xf8] sm:$0xff]
        %v792 = vld [vmem:[%s349] sm:$0xf]
        %v793 = vmul.f32 %v792, 4.0
        %v795 = vperm.slane %v793, 0
        %v796 = vperm.slane %v793, 1
        %v797 = vperm.slane %v793, 2
        %v798 = vperm.slane %v793, 3
        %v807 = vunpack.c.l.b16 %v756
        %v808 = vunpack.c.l.b16 %v757
        %v809 = vunpack.c.l.b16 %v758
        %v810 = vunpack.c.l.b16 %v759
        %v811 = vpack.c.b16 %v808, %v807
        %v812 = vpack.c.b16 %v810, %v809
        %v847 = vunpack.c.l.b16 %v760
        %v848 = vunpack.c.h.b16 %v760
        %v849 = vunpack.c.l.b16 %v761
        %v850 = vunpack.c.h.b16 %v761
        %v851 = vunpack.c.l.b16 %v762
        %v852 = vunpack.c.h.b16 %v762
        %v853 = vunpack.c.l.b16 %v763
        %v854 = vunpack.c.h.b16 %v763
        %v855 = vunpack.c.l.b16 %v764
        %v856 = vunpack.c.h.b16 %v764
        %v857 = vunpack.c.l.b16 %v765
        %v858 = vunpack.c.h.b16 %v765
        %v859 = vunpack.c.l.b16 %v766
        %v860 = vunpack.c.h.b16 %v766
        %v861 = vunpack.c.l.b16 %v767
        %v862 = vunpack.c.h.b16 %v767
        %v863 = vunpack.c.l.b16 %v768
        %v864 = vunpack.c.h.b16 %v768
        %v865 = vunpack.c.l.b16 %v769
        %v866 = vunpack.c.h.b16 %v769
        %v867 = vunpack.c.l.b16 %v770
        %v868 = vunpack.c.h.b16 %v770
        %v869 = vunpack.c.l.b16 %v771
        %v870 = vunpack.c.h.b16 %v771
        %v871 = vunpack.c.l.b16 %v772
        %v872 = vunpack.c.h.b16 %v772
        %v873 = vunpack.c.l.b16 %v773
        %v874 = vunpack.c.h.b16 %v773
        %v875 = vunpack.c.l.b16 %v774
        %v876 = vunpack.c.h.b16 %v774
        %v877 = vunpack.c.l.b16 %v775
        %v878 = vunpack.c.h.b16 %v775
        %v879 = vunpack.c.l.b16 %v776
        %v880 = vunpack.c.h.b16 %v776
        %v881 = vunpack.c.l.b16 %v777
        %v882 = vunpack.c.h.b16 %v777
        %v883 = vunpack.c.l.b16 %v778
        %v884 = vunpack.c.h.b16 %v778
        %v885 = vunpack.c.l.b16 %v779
        %v886 = vunpack.c.h.b16 %v779
        %v887 = vunpack.c.l.b16 %v780
        %v888 = vunpack.c.h.b16 %v780
        %v889 = vunpack.c.l.b16 %v781
        %v890 = vunpack.c.h.b16 %v781
        %v891 = vunpack.c.l.b16 %v782
        %v892 = vunpack.c.h.b16 %v782
        %v893 = vunpack.c.l.b16 %v783
        %v894 = vunpack.c.h.b16 %v783
        %v895 = vunpack.c.l.b16 %v784
        %v896 = vunpack.c.h.b16 %v784
        %v897 = vunpack.c.l.b16 %v785
        %v898 = vunpack.c.h.b16 %v785
        %v899 = vunpack.c.l.b16 %v786
        %v900 = vunpack.c.h.b16 %v786
        %v901 = vunpack.c.l.b16 %v787
        %v902 = vunpack.c.h.b16 %v787
        %v903 = vunpack.c.l.b16 %v788
        %v904 = vunpack.c.h.b16 %v788
        %v905 = vunpack.c.l.b16 %v789
        %v906 = vunpack.c.h.b16 %v789
        %v907 = vunpack.c.l.b16 %v790
        %v908 = vunpack.c.h.b16 %v790
        %v909 = vunpack.c.l.b16 %v791
        %v910 = vunpack.c.h.b16 %v791
        %v911 = vpack.c.b16 %v851, %v847
        %v912 = vpack.c.b16 %v852, %v848
        %v913 = vpack.c.b16 %v853, %v849
        %v914 = vpack.c.b16 %v854, %v850
        %v915 = vpack.c.b16 %v859, %v855
        %v916 = vpack.c.b16 %v860, %v856
        %v917 = vpack.c.b16 %v861, %v857
        %v918 = vpack.c.b16 %v862, %v858
        %v919 = vpack.c.b16 %v867, %v863
        %v920 = vpack.c.b16 %v868, %v864
        %v921 = vpack.c.b16 %v869, %v865
        %v922 = vpack.c.b16 %v870, %v866
        %v923 = vpack.c.b16 %v875, %v871
        %v924 = vpack.c.b16 %v876, %v872
        %v925 = vpack.c.b16 %v877, %v873
        %v926 = vpack.c.b16 %v878, %v874
        %v927 = vpack.c.b16 %v883, %v879
        %v928 = vpack.c.b16 %v884, %v880
        %v929 = vpack.c.b16 %v885, %v881
        %v930 = vpack.c.b16 %v886, %v882
        %v931 = vpack.c.b16 %v891, %v887
        %v932 = vpack.c.b16 %v892, %v888
        %v933 = vpack.c.b16 %v893, %v889
        %v934 = vpack.c.b16 %v894, %v890
        %v935 = vpack.c.b16 %v899, %v895
        %v936 = vpack.c.b16 %v900, %v896
        %v937 = vpack.c.b16 %v901, %v897
        %v938 = vpack.c.b16 %v902, %v898
        %v939 = vpack.c.b16 %v907, %v903
        %v940 = vpack.c.b16 %v908, %v904
        %v941 = vpack.c.b16 %v909, %v905
        %v942 = vpack.c.b16 %v910, %v906
        %975 = vmatpush.bf16.msra.mxu0 %v939
        %976 = vmatpush.bf16.msra.mxu0 %v935
        %977 = vmatpush.bf16.msra.mxu0 %v931
        %978 = vmatpush.bf16.msra.mxu0 %v927
        %979 = vmatpush.bf16.msra.mxu0 %v923
        %980 = vmatpush.bf16.msra.mxu0 %v919
        %981 = vmatpush.bf16.msra.mxu0 %v915
        %982 = vmatpush.bf16.msra.mxu0 %v911
        %983 = vmatmul.bf16.gmra.mxu0 %v811
        %v984 = vpop.f32.mrf.mxu0
        %v985 = vadd.f32 %v795, %v984
        %v986 = vpop.f32.mrf.mxu0
        %v987 = vadd.f32 %v795, %v986
        %988 = vmatmul.bf16.gmra.mxu0 %v812
        %v989 = vpop.f32.mrf.mxu0
        %v990 = vadd.f32 %v795, %v989
        %v991 = vpop.f32.mrf.mxu0
        %v992 = vadd.f32 %v795, %v991
        %993 = vdwg.mxu0
        %994 = vmatpush.bf16.msra.mxu0 %v940
        %995 = vmatpush.bf16.msra.mxu0 %v936
        %996 = vmatpush.bf16.msra.mxu0 %v932
        %997 = vmatpush.bf16.msra.mxu0 %v928
        %998 = vmatpush.bf16.msra.mxu0 %v924
        %999 = vmatpush.bf16.msra.mxu0 %v920
        %1000 = vmatpush.bf16.msra.mxu0 %v916
        %1001 = vmatpush.bf16.msra.mxu0 %v912
        %1002 = vmatmul.bf16.gmra.mxu0 %v811
        %v1003 = vpop.f32.mrf.mxu0
        %v1004 = vadd.f32 %v796, %v1003
        %v1005 = vpop.f32.mrf.mxu0
        %v1006 = vadd.f32 %v796, %v1005
        %1007 = vmatmul.bf16.gmra.mxu0 %v812
        %v1008 = vpop.f32.mrf.mxu0
        %v1009 = vadd.f32 %v796, %v1008
        %v1010 = vpop.f32.mrf.mxu0
        %v1011 = vadd.f32 %v796, %v1010
        %1012 = vdwg.mxu0
        %1013 = vmatpush.bf16.msra.mxu0 %v941
        %1014 = vmatpush.bf16.msra.mxu0 %v937
        %1015 = vmatpush.bf16.msra.mxu0 %v933
        %1016 = vmatpush.bf16.msra.mxu0 %v929
        %1017 = vmatpush.bf16.msra.mxu0 %v925
        %1018 = vmatpush.bf16.msra.mxu0 %v921
        %1019 = vmatpush.bf16.msra.mxu0 %v917
        %1020 = vmatpush.bf16.msra.mxu0 %v913
        %1021 = vmatmul.bf16.gmra.mxu0 %v811
        %v1022 = vpop.f32.mrf.mxu0
        %v1023 = vadd.f32 %v797, %v1022
        %v1024 = vpop.f32.mrf.mxu0
        %v1025 = vadd.f32 %v797, %v1024
        %1026 = vmatmul.bf16.gmra.mxu0 %v812
        %v1027 = vpop.f32.mrf.mxu0
        %v1028 = vadd.f32 %v797, %v1027
        %v1029 = vpop.f32.mrf.mxu0
        %v1030 = vadd.f32 %v797, %v1029
        %1031 = vdwg.mxu0
        %1032 = vmatpush.bf16.msra.mxu0 %v942
        %1033 = vmatpush.bf16.msra.mxu0 %v938
        %1034 = vmatpush.bf16.msra.mxu0 %v934
        %1035 = vmatpush.bf16.msra.mxu0 %v930
        %1036 = vmatpush.bf16.msra.mxu0 %v926
        %1037 = vmatpush.bf16.msra.mxu0 %v922
        %1038 = vmatpush.bf16.msra.mxu0 %v918
        %1039 = vmatpush.bf16.msra.mxu0 %v914
        %1040 = vmatmul.bf16.gmra.mxu0 %v811
        %v1041 = vpop.f32.mrf.mxu0
        %v1042 = vadd.f32 %v798, %v1041
        %v1043 = vpop.f32.mrf.mxu0
        %v1044 = vadd.f32 %v798, %v1043
        %1045 = vmatmul.bf16.gmra.mxu0 %v812
        %v1046 = vpop.f32.mrf.mxu0
        %v1047 = vadd.f32 %v798, %v1046
        %v1048 = vpop.f32.mrf.mxu0
        %v1049 = vadd.f32 %v798, %v1048
        %1050 = vdwg.mxu0
        %1051 = vst [vmem:[%s338] sm:$0xff] %v985
        %1052 = vst [vmem:[%s338 + $0x8] sm:$0xff] %v1004
        %1053 = vst [vmem:[%s338 + $0x10] sm:$0xff] %v1023
        %1054 = vst [vmem:[%s338 + $0x18] sm:$0xff] %v1042
        %1055 = vst [vmem:[%s338 + $0x20] sm:$0xff] %v987
        %1056 = vst [vmem:[%s338 + $0x28] sm:$0xff] %v1006
        %1057 = vst [vmem:[%s338 + $0x30] sm:$0xff] %v1025
        %1058 = vst [vmem:[%s338 + $0x38] sm:$0xff] %v1044
        %1059 = vst [vmem:[%s338 + $0x40] sm:$0xff] %v990
        %1060 = vst [vmem:[%s338 + $0x48] sm:$0xff] %v1009
        %1061 = vst [vmem:[%s338 + $0x50] sm:$0xff] %v1028
        %1062 = vst [vmem:[%s338 + $0x58] sm:$0xff] %v1047
        %1063 = vst [vmem:[%s338 + $0x60] sm:$0xff] %v992
        %1064 = vst [vmem:[%s338 + $0x68] sm:$0xff] %v1011
        %1065 = vst [vmem:[%s338 + $0x70] sm:$0xff] %v1030
        %1066 = vst [vmem:[%s338 + $0x78] sm:$0xff] %v1049
        %s1067 = sand.u32 %s205, 1
        %s1068 = sand.u32 %s205, 1
        %s1069 = smul.addr %s1068, 128
        %s1070 = scalar_lea.vmem [#allocation5], %s1069
        // Predicated region
        $region57: #{_lambda_.1} parent=47 // pred_check
          %p1071 = pneg %p215
        $region58: #{_lambda_.1} parent=47 // pred_check_branch
          %1073 = sbr.rel (%p1071) target = $region60
        $region59: #{_lambda_.1} parent=47 // pred_region
          %s1074 = smul.u32 4, %s25
          %s1075 = smul.u32 4, %s26
          %s1076 = smul.addr %s1074, 8
          %s1077 = sadd.s32 %s1075, %s1076
          %s1078 = smul.addr %s1077, 8
          %s1079 = scalar_lea.vmem %s7, %s1078
          // Predicated region
          $region61: #{_lambda_.1} parent=59 // pred_check
            _
          $region62: #{_lambda_.1} parent=59 // pred_check_branch
            %1081 = sbr.rel (0) target = $region64
          $region63: #{_lambda_.1} parent=59 // pred_region
            // Predicated region
            $region65: #{_lambda_.1} parent=63 // pred_check
              _
            $region66: #{_lambda_.1} parent=63 // pred_check_branch
              %1083 = sbr.rel (0) target = $region68
            $region67: #{_lambda_.1} parent=63 // pred_region
              loop: start=0, step=1, limit=1
              $region69: #{_lambda_.1} parent=67 // loop_pre_header
                _
              $region70: #{_lambda_.1} parent=67 // loop_header
                %s1085 = sphi 0, %s1089
                %p1086 = scmp.ge.s32.totalorder %s1085, 1
                %s1090 = sphi %s1070, %s1070
                %s1091 = sphi %s1079, %s1079
              $region71: #{_lambda_.1} parent=67 // loop_header_branch
                %1088 = sbr.rel (%p1086) target = $region75
              $region72: #{_lambda_.1} parent=67 // loop_body
                %v1092 = vld [vmem:[%s1090] sm:$0xff]
                %1093 = vst [vmem:[%s1091] sm:$0xff] %v1092
                %v1094 = vld [vmem:[%s1090 + $0x8] sm:$0xff]
                %1095 = vst [vmem:[%s1091 + $0x8] sm:$0xff] %v1094
                %v1096 = vld [vmem:[%s1090 + $0x10] sm:$0xff]
                %1097 = vst [vmem:[%s1091 + $0x10] sm:$0xff] %v1096
                %v1098 = vld [vmem:[%s1090 + $0x18] sm:$0xff]
                %1099 = vst [vmem:[%s1091 + $0x18] sm:$0xff] %v1098
                %v1100 = vld [vmem:[%s1090 + $0x20] sm:$0xff]
                %1101 = vst [vmem:[%s1091 + $0x40] sm:$0xff] %v1100
                %v1102 = vld [vmem:[%s1090 + $0x28] sm:$0xff]
                %1103 = vst [vmem:[%s1091 + $0x48] sm:$0xff] %v1102
                %v1104 = vld [vmem:[%s1090 + $0x30] sm:$0xff]
                %1105 = vst [vmem:[%s1091 + $0x50] sm:$0xff] %v1104
                %v1106 = vld [vmem:[%s1090 + $0x38] sm:$0xff]
                %1107 = vst [vmem:[%s1091 + $0x58] sm:$0xff] %v1106
                %v1108 = vld [vmem:[%s1090 + $0x40] sm:$0xff]
                %1109 = vst [vmem:[%s1091 + $0x80] sm:$0xff] %v1108
                %v1110 = vld [vmem:[%s1090 + $0x48] sm:$0xff]
                %1111 = vst [vmem:[%s1091 + $0x88] sm:$0xff] %v1110
                %v1112 = vld [vmem:[%s1090 + $0x50] sm:$0xff]
                %1113 = vst [vmem:[%s1091 + $0x90] sm:$0xff] %v1112
                %v1114 = vld [vmem:[%s1090 + $0x58] sm:$0xff]
                %1115 = vst [vmem:[%s1091 + $0x98] sm:$0xff] %v1114
                %v1116 = vld [vmem:[%s1090 + $0x60] sm:$0xff]
                %1117 = vst [vmem:[%s1091 + $0xc0] sm:$0xff] %v1116
                %v1118 = vld [vmem:[%s1090 + $0x68] sm:$0xff]
                %1119 = vst [vmem:[%s1091 + $0xc8] sm:$0xff] %v1118
                %v1120 = vld [vmem:[%s1090 + $0x70] sm:$0xff]
                %1121 = vst [vmem:[%s1091 + $0xd0] sm:$0xff] %v1120
                %v1122 = vld [vmem:[%s1090 + $0x78] sm:$0xff]
                %1123 = vst [vmem:[%s1091 + $0xd8] sm:$0xff] %v1122
              $region73: #{_lambda_.1} parent=67 // loop_footer
                %s1089 = sadd.s32 1, %s1085
              $region74: #{_lambda_.1} parent=67 // loop_footer_branch
                %1084 = sbr.rel target = $region70
              $region75: #{_lambda_.1} parent=67 // loop_exit
                _
            $region68: #{_lambda_.1} parent=63 // pred_fallthru
              _
            // Predicated region
            $region76: #{_lambda_.1} parent=63 // pred_check
              _
            $region77: #{_lambda_.1} parent=63 // pred_check_branch
              %1125 = sbr.rel target = $region79
            $region78: #{_lambda_.1} parent=63 // pred_region
              _
            $region79: #{_lambda_.1} parent=63 // pred_fallthru
              _
          $region64: #{_lambda_.1} parent=59 // pred_fallthru
            _
          %1126 = vnop
        $region60: #{_lambda_.1} parent=47 // pred_fallthru
          _
      $region48: #{_lambda_.1} parent=5 // pred_fallthru
        _
      %p1127 = scmp.le.s32.totalorder 2, %s16
      // Predicated region
      $region80: #{_lambda_.1} parent=5 // pred_check
        %p1128 = pneg %p1127
      $region81: #{_lambda_.1} parent=5 // pred_check_branch
        %1130 = sbr.rel (%p1128) target = $region83
      $region82: #{_lambda_.1} parent=5 // pred_region
        %s1131 = ssub.s32 %s16, 2
        // Predicated region
        $region84: #{_lambda_.1} parent=82 // pred_check
          %p1132 = pneg %p221
        $region85: #{_lambda_.1} parent=82 // pred_check_branch
          %1134 = sbr.rel (%p1132) target = $region87
        $region86: #{_lambda_.1} parent=82 // pred_region
          %s1135 = sand.u32 %s206, 1
          %s1136 = sand.u32 %s206, 1
          %s1137 = smul.addr %s1136, 128
          %s1138 = scalar_lea.vmem [#allocation5], %s1137
        $region87: #{_lambda_.1} parent=82 // pred_fallthru
          _
      $region83: #{_lambda_.1} parent=5 // pred_fallthru
        _
    $region6: #{_lambda_.1} parent=1 // loop_footer
      %s20 = sadd.s32 1, %s16
    $region7: #{_lambda_.1} parent=1 // loop_footer_branch
      %15 = sbr.rel target = $region3
    $region8: #{_lambda_.1} parent=1 // loop_exit
      _
    %1139 = vsyncpa [#allocation4], 1
    %s1140 = scalar_lea.sflag [#allocation4], 1
    %1141 = vsyncpa %s1140, 1

</llo_original>
